<compile_context>
chip_gen: v7x
topology: tpu7x:2x2x1
jax: 0.10.0
libtpu: 0.0.40
codegen_flags: <defaults>
</compile_context>

<pallas_src>
import functools

import jax
import jax.numpy as jnp
from jax.experimental import pallas as pl
from jax.experimental.pallas import tpu as pltpu


def _adapter_kernel(scale_ref, x_ref, w1_ref, b1_ref, w2_ref, b2_ref, o_ref, *,
                    add_residual):
    """One grid step processes a (C_in, THW) channel-major pixel tile.

    scale_ref : SMEM (1,) f32          -- Scaler scale
    x_ref     : VMEM (1, C_in, THW)    -- NCHW tile (single batch element)
    w1_ref    : VMEM (hidden, C_in)    -- conv1 1x1 weight
    b1_ref    : VMEM (hidden, 1)
    w2_ref    : VMEM (C_out, hidden)   -- conv2 1x1 weight
    b2_ref    : VMEM (C_out, 1)
    o_ref     : VMEM (1, C_out, THW)
    """
    x = x_ref[0]                                       # (C_in, THW)

    # conv1 (1x1) == channel matmul, f32 accumulation on the MXU.
    h = jnp.dot(w1_ref[...], x, preferred_element_type=jnp.float32)
    h = h + b1_ref[...].astype(jnp.float32)            # (hidden, THW)

    # GELU (tanh approximation; keeps the transcendental on the EUP).
    # TODO(synk): PyTorch nn.GELU default is the exact erf form; the tanh
    # approximation matches to ~1e-3 relative.
    c = 0.7978845608028654  # sqrt(2/pi)
    h = 0.5 * h * (1.0 + jnp.tanh(c * (h + 0.044715 * h * h * h)))

    # conv2 (1x1)
    y = jnp.dot(w2_ref[...], h.astype(w2_ref.dtype),
                preferred_element_type=jnp.float32)
    y = y + b2_ref[...].astype(jnp.float32)            # (C_out, THW)

    # Scaler (f32 scalar from SMEM).
    y = y * scale_ref[0]

    if add_residual:                                   # mode == 'before'
        y = y + x.astype(jnp.float32)

    o_ref[0] = y.astype(o_ref.dtype)


def conv2d_adapter_forward(x, w1, b1, w2, b2, scale, *,
                           add_residual=True, block_hw=1024):
    """Fused Conv2dAdapter branch: scale * conv2(gelu(conv1(x))) [+ x].

    x  : (B, C_in, H, W)   NCHW, exactly as the PyTorch module expects.
    w1 : (hidden, C_in)    conv1 1x1 weight (kernel spatial dims squeezed)
    b1 : (hidden,)
    w2 : (C_out, hidden)   conv2 1x1 weight
    b2 : (C_out,)
    scale : scalar (Scaler)
    """
    B, C_in, H, W = x.shape
    hidden = w1.shape[0]
    C_out = w2.shape[0]
    if add_residual:
        assert C_out == C_in, "residual add needs out_channels == in_channels"
    HW = H * W

    # Pure reshape (no transpose / extra HBM pass): H*W lands on the lane axis.
    x3 = x.reshape(B, C_in, HW)

    # Lane tile: full H*W when small, otherwise a multiple of 128.  The ragged
    # last block (HW % thw != 0) is handled by Pallas; per-pixel compute only,
    # so padded lanes never contaminate valid outputs.
    if HW <= block_hw:
        thw = HW
    else:
        thw = max(128, (block_hw // 128) * 128)
    n_hw = pl.cdiv(HW, thw)

    dt = x.dtype
    w1c = w1.astype(dt)
    w2c = w2.astype(dt)
    b1c = b1.reshape(hidden, 1).astype(jnp.float32)
    b2c = b2.reshape(C_out, 1).astype(jnp.float32)
    scale_arr = jnp.asarray(scale, dtype=jnp.float32).reshape((1,))   # f32 SMEM

    kernel = functools.partial(_adapter_kernel, add_residual=add_residual)

    out3 = pl.pallas_call(
        kernel,
        out_shape=jax.ShapeDtypeStruct((B, C_out, HW), x.dtype),
        grid=(B, n_hw),
        in_specs=[
            pl.BlockSpec(memory_space=pltpu.SMEM),                 # scale (f32)
            pl.BlockSpec((1, C_in, thw), lambda b, i: (b, 0, i)),  # x tile
            pl.BlockSpec((hidden, C_in), lambda b, i: (0, 0)),     # W1 (resident)
            pl.BlockSpec((hidden, 1), lambda b, i: (0, 0)),        # b1
            pl.BlockSpec((C_out, hidden), lambda b, i: (0, 0)),    # W2 (resident)
            pl.BlockSpec((C_out, 1), lambda b, i: (0, 0)),         # b2
        ],
        out_specs=pl.BlockSpec((1, C_out, thw), lambda b, i: (b, 0, i)),
        compiler_params=pltpu.CompilerParams(
            dimension_semantics=("parallel", "parallel")),
    )(scale_arr, x3, w1c, b1c, w2c, b2c)

    return out3.reshape(B, C_out, H, W)


if __name__ == "__main__":
    B, C, H, W = 2, 32, 16, 16      # batch, in_channels, spatial
    HID = 8                          # down_sample (adapter hidden dim)
    SCALE = 2.0                      # Scaler(scale=2.0)
    MODE = "before"                  # kernel covers adapter(x) + x

    key = jax.random.PRNGKey(0)
    kx, k1, k2, kb1, kb2 = jax.random.split(key, 5)

    x = jax.random.normal(kx, (B, C, H, W), dtype=jnp.float32)
    # NOTE: the module's reset_parameters() zero-inits conv2 (adapter == no-op
    # at init); small random weights are used here so the math is exercised.
    w1 = jax.random.normal(k1, (HID, C), dtype=jnp.float32) * 0.05
    b1 = jax.random.normal(kb1, (HID,), dtype=jnp.float32) * 0.05
    w2 = jax.random.normal(k2, (C, HID), dtype=jnp.float32) * 0.05
    b2 = jax.random.normal(kb2, (C,), dtype=jnp.float32) * 0.05

    # Pure-JAX reference (same tanh-approx GELU).
    def ref_fn(xx, Bv, Hv, Wv):
        xf = jnp.transpose(xx, (0, 2, 3, 1)).reshape(-1, C)
        h = xf @ w1.T + b1
        c = 0.7978845608028654
        h = 0.5 * h * (1.0 + jnp.tanh(c * (h + 0.044715 * h ** 3)))
        y = (h @ w2.T + b2) * SCALE + xf
        return jnp.transpose(y.reshape(Bv, Hv, Wv, C), (0, 3, 1, 2))

    out = conv2d_adapter_forward(x, w1, b1, w2, b2, SCALE,
                                 add_residual=(MODE == "before"))
    out = jax.block_until_ready(out)
    ref = ref_fn(x, B, H, W)
    assert out.shape == (B, C, H, W), out.shape
    assert jnp.allclose(out, ref, atol=2e-3, rtol=2e-3), (
        float(jnp.max(jnp.abs(out - ref))))

    # Ragged H*W path (no jnp.pad / slice in the wrapper): H*W=144 with a
    # 128-wide lane tile exercises the masked last block.
    H2 = W2 = 12
    x2 = jax.random.normal(jax.random.PRNGKey(1), (B, C, H2, W2),
                           dtype=jnp.float32)
    out2 = conv2d_adapter_forward(x2, w1, b1, w2, b2, SCALE,
                                  add_residual=True, block_hw=128)
    out2 = jax.block_until_ready(out2)
    ref2 = ref_fn(x2, B, H2, W2)
    assert jnp.allclose(out2, ref2, atol=2e-3, rtol=2e-3), (
        float(jnp.max(jnp.abs(out2 - ref2))))

    # TODO(synk): the wrapped `module(...)` call in Conv2dAdapter.forward is an
    # arbitrary external nn.Module and must be applied outside this kernel.
    print("KERNEL_OK")
</pallas_src>

<mosaic_0001>
module attributes {stable_mosaic.version = 11 : i64} {
  func.func @_adapter_kernel(%arg0: i32, %arg1: i32, %arg2: memref<1xf32, #tpu.memory_space<smem>>, %arg3: memref<1x32x256xf32, #tpu.memory_space<vmem>>, %arg4: memref<8x32xf32, #tpu.memory_space<vmem>>, %arg5: memref<8x1xf32, #tpu.memory_space<vmem>>, %arg6: memref<32x8xf32, #tpu.memory_space<vmem>>, %arg7: memref<32x1xf32, #tpu.memory_space<vmem>>, %arg8: memref<1x32x256xf32, #tpu.memory_space<vmem>>) attributes {dimension_semantics = [#tpu.dimension_semantics<parallel>, #tpu.dimension_semantics<parallel>], iteration_bounds = array<i64: 2, 1>, scalar_prefetch = 0 : i64, scratch_operands = 0 : i64, tpu.core_type = #tpu.core_type<tc>, window_params = [{transform_indices = @transform_0, window_bounds = array<i64: 1>}, {transform_indices = @transform_1, window_bounds = array<i64: 1, 32, 256>}, {pipeline_mode = #tpu.pipeline_mode<synchronous>, transform_indices = @transform_2, window_bounds = array<i64: 8, 32>}, {pipeline_mode = #tpu.pipeline_mode<synchronous>, transform_indices = @transform_3, window_bounds = array<i64: 8, 1>}, {pipeline_mode = #tpu.pipeline_mode<synchronous>, transform_indices = @transform_4, window_bounds = array<i64: 32, 8>}, {pipeline_mode = #tpu.pipeline_mode<synchronous>, transform_indices = @transform_5, window_bounds = array<i64: 32, 1>}, {transform_indices = @transform_6, window_bounds = array<i64: 1, 32, 256>}]} {
    %c0 = arith.constant 0 : index
    %c0_0 = arith.constant 0 : index
    %c0_1 = arith.constant 0 : index
    %0 = vector.load %arg3[%c0, %c0_0, %c0_1] : memref<1x32x256xf32, #tpu.memory_space<vmem>>, vector<1x32x256xf32>
    %1 = vector.shape_cast %0 : vector<1x32x256xf32> to vector<32x256xf32>
    %c0_2 = arith.constant 0 : index
    %c0_3 = arith.constant 0 : index
    %2 = vector.load %arg4[%c0_2, %c0_3] : memref<8x32xf32, #tpu.memory_space<vmem>>, vector<8x32xf32>
    %cst = arith.constant dense<0.000000e+00> : vector<8x256xf32>
    %3 = tpu.matmul %2, %1, %cst {dimension_numbers = #tpu.dot_dimension_numbers<[1], [0], [0], [1], [0, 0, 1, 1], [], []>} : vector<8x32xf32>, vector<32x256xf32>, vector<8x256xf32> -> vector<8x256xf32>
    %c0_4 = arith.constant 0 : index
    %c0_5 = arith.constant 0 : index
    %4 = vector.load %arg5[%c0_4, %c0_5] : memref<8x1xf32, #tpu.memory_space<vmem>>, vector<8x1xf32>
    %5 = vector.broadcast %4 : vector<8x1xf32> to vector<8x256xf32>
    %6 = arith.addf %3, %5 : vector<8x256xf32>
    %cst_6 = arith.constant 5.000000e-01 : f32
    %7 = vector.broadcast %cst_6 : f32 to vector<8x256xf32>
    %8 = arith.mulf %7, %6 : vector<8x256xf32>
    %cst_7 = arith.constant 4.471500e-02 : f32
    %9 = vector.broadcast %cst_7 : f32 to vector<8x256xf32>
    %10 = arith.mulf %9, %6 : vector<8x256xf32>
    %11 = arith.mulf %10, %6 : vector<8x256xf32>
    %12 = arith.mulf %11, %6 : vector<8x256xf32>
    %13 = arith.addf %6, %12 : vector<8x256xf32>
    %cst_8 = arith.constant 0.797884583 : f32
    %14 = vector.broadcast %cst_8 : f32 to vector<8x256xf32>
    %15 = arith.mulf %14, %13 : vector<8x256xf32>
    %16 = math.tanh %15 : vector<8x256xf32>
    %cst_9 = arith.constant 1.000000e+00 : f32
    %17 = vector.broadcast %cst_9 : f32 to vector<8x256xf32>
    %18 = arith.addf %17, %16 : vector<8x256xf32>
    %19 = arith.mulf %8, %18 : vector<8x256xf32>
    %c0_10 = arith.constant 0 : index
    %c0_11 = arith.constant 0 : index
    %20 = vector.load %arg6[%c0_10, %c0_11] : memref<32x8xf32, #tpu.memory_space<vmem>>, vector<32x8xf32>
    %cst_12 = arith.constant dense<0.000000e+00> : vector<32x256xf32>
    %21 = tpu.matmul %20, %19, %cst_12 {dimension_numbers = #tpu.dot_dimension_numbers<[1], [0], [0], [1], [0, 0, 1, 1], [], []>} : vector<32x8xf32>, vector<8x256xf32>, vector<32x256xf32> -> vector<32x256xf32>
    %c0_13 = arith.constant 0 : index
    %c0_14 = arith.constant 0 : index
    %22 = vector.load %arg7[%c0_13, %c0_14] : memref<32x1xf32, #tpu.memory_space<vmem>>, vector<32x1xf32>
    %23 = vector.broadcast %22 : vector<32x1xf32> to vector<32x256xf32>
    %24 = arith.addf %21, %23 : vector<32x256xf32>
    %c0_15 = arith.constant 0 : index
    %25 = memref.load %arg2[%c0_15] : memref<1xf32, #tpu.memory_space<smem>>
    %26 = vector.broadcast %25 : f32 to vector<32x256xf32>
    %27 = arith.mulf %24, %26 : vector<32x256xf32>
    %28 = arith.addf %27, %1 : vector<32x256xf32>
    %c0_16 = arith.constant 0 : index
    %c0_17 = arith.constant 0 : index
    %c0_18 = arith.constant 0 : index
    %29 = vector.load %arg8[%c0_16, %c0_17, %c0_18] : memref<1x32x256xf32, #tpu.memory_space<vmem>>, vector<1x32x256xf32>
    %30 = vector.shape_cast %29 : vector<1x32x256xf32> to vector<32x256xf32>
    %31 = vector.shape_cast %28 : vector<32x256xf32> to vector<1x32x256xf32>
    tpu.vector_store %arg8[%c0_16, %c0_17, %c0_18], %31 {strides = array<i32>} : memref<1x32x256xf32, #tpu.memory_space<vmem>>, vector<1x32x256xf32>,
    return
  }
  func.func @transform_0(%arg0: i32, %arg1: i32) -> i32 {
    %c0_i32 = arith.constant 0 : i32
    %c0_i32_0 = arith.constant 0 : i32
    return %c0_i32 : i32
  }
  func.func @transform_1(%arg0: i32, %arg1: i32) -> (i32, i32, i32) {
    %c0_i32 = arith.constant 0 : i32
    %c0_i32_0 = arith.constant 0 : i32
    return %arg0, %c0_i32, %arg1 : i32, i32, i32
  }
  func.func @transform_2(%arg0: i32, %arg1: i32) -> (i32, i32) {
    %c0_i32 = arith.constant 0 : i32
    %c0_i32_0 = arith.constant 0 : i32
    %c0_i32_1 = arith.constant 0 : i32
    return %c0_i32, %c0_i32_0 : i32, i32
  }
  func.func @transform_3(%arg0: i32, %arg1: i32) -> (i32, i32) {
    %c0_i32 = arith.constant 0 : i32
    %c0_i32_0 = arith.constant 0 : i32
    %c0_i32_1 = arith.constant 0 : i32
    return %c0_i32, %c0_i32_0 : i32, i32
  }
  func.func @transform_4(%arg0: i32, %arg1: i32) -> (i32, i32) {
    %c0_i32 = arith.constant 0 : i32
    %c0_i32_0 = arith.constant 0 : i32
    %c0_i32_1 = arith.constant 0 : i32
    return %c0_i32, %c0_i32_0 : i32, i32
  }
  func.func @transform_5(%arg0: i32, %arg1: i32) -> (i32, i32) {
    %c0_i32 = arith.constant 0 : i32
    %c0_i32_0 = arith.constant 0 : i32
    %c0_i32_1 = arith.constant 0 : i32
    return %c0_i32, %c0_i32_0 : i32, i32
  }
  func.func @transform_6(%arg0: i32, %arg1: i32) -> (i32, i32, i32) {
    %c0_i32 = arith.constant 0 : i32
    %c0_i32_0 = arith.constant 0 : i32
    return %arg0, %c0_i32, %arg1 : i32, i32, i32
  }
}

</mosaic_0001>

<llo_original>
// kernel: tpu_custom_call.1
$region0: #{tpu_custom_call.1}
  #allocation0 [shape = 'u32[]', space=smem, size = 0x4, offset = 0x4, fixed_abs, tag = 'smem constant byte address 0x4 - core index']
  #allocation1 [shape = 'u32[144,128]{1,0:T(1,128)}', space=vmem, size = 0x12000, scoped, tag = 'internal scratch']
  #allocation2 [shape = 'f32[1]{0:T(128)S(6)}', space=smem, size = 0x200, scoped, tag = 'scoped memory for tpu_custom_call.1']
  %s0 = inlined_call_operand.<no memory space> [shape: f32[1], index: 0, kind: input, shape index: {}]
  %s1 = inlined_call_operand.hbm [shape: f32[2,32,256], index: 1, kind: input, shape index: {}]
  %s2 = inlined_call_operand.vmem [shape: f32[8,32], index: 2, kind: input, shape index: {}]
  %s3 = inlined_call_operand.vmem [shape: f32[8,1], index: 3, kind: input, shape index: {}]
  %s4 = inlined_call_operand.vmem [shape: f32[32,8], index: 4, kind: input, shape index: {}]
  %s5 = inlined_call_operand.vmem [shape: f32[32,1], index: 5, kind: input, shape index: {}]
  %s6 = inlined_call_operand.hbm [shape: f32[2,32,256], index: 6, kind: output, shape index: {}]
  %s7 = sld [smem:[#allocation0]]
  $region61: #{tpu_custom_call.1} parent=0
    _
  %s9 = ssub.s32 1, %s7
  %s10 = scalar_select 0, %s9, %s7
  %11 = sst [smem:[#allocation2]] %s0
  $region1: #{tpu_custom_call.1} parent=0
    #allocation3 [shape = 'u8[65536]{0}', space=vmem, size = 0x10000, scoped, tag = 'input window, operand 1']
    #allocation4 [shape = 's32[2]{0}', space=sflag, size = 0x8, scoped, tag = 'scoped memory for tpu_custom_call.1']
    #allocation5 [shape = 's32[2]{0}', space=sflag, size = 0x8, scoped, tag = 'scoped memory for tpu_custom_call.1']
    #allocation6 [shape = 'u8[65536]{0}', space=vmem, size = 0x10000, scoped, tag = 'output window, operand 0']
    %12 = vsyncpa [#allocation4], 0
    %s13 = scalar_lea.sflag [#allocation4], 1
    %14 = vsyncpa %s13, 0
    %15 = vsyncpa [#allocation5], 0
    %s16 = scalar_lea.sflag [#allocation5], 1
    %17 = vsyncpa %s16, 0
    loop: start=0, step=1, limit=4
    $region2: #{tpu_custom_call.1} parent=1 // loop_pre_header
      _
    $region3: #{tpu_custom_call.1} parent=1 // loop_header
      %s19 = sphi 0, %s23
      %p20 = scmp.ge.s32.totalorder %s19, 4
      %s26 = sphi 0, %s38
      %s27 = sphi 0, %s34
      %s28 = sphi 0, %s26
      %s29 = sphi 0, %s27
      %s30 = sphi 0, %s28
      %s31 = sphi 0, %s29
      %s39 = sphi 0, %s39
      %s41 = sphi 0, %s39
      %s42 = sphi 0, %s41
      %s56 = sphi 0, %s42
      %s64 = sphi 0, %s66
      %s67 = sphi 0, %s64
      %s68 = sphi 0, %s67
      %s84 = sphi 0, %s68
      %s88 = sphi 0, %s88
      %s90 = sphi 0, %s88
      %s91 = sphi 0, %s90
      %s105 = sphi 0, %s91
      %s109 = sphi 0, %s109
      %s111 = sphi 0, %s109
      %s112 = sphi 0, %s111
      %s126 = sphi 0, %s112
      %s130 = sphi 0, %s130
      %s132 = sphi 0, %s130
      %s133 = sphi 0, %s132
      %s147 = sphi 0, %s133
      %s151 = sphi 0, %s151
      %s153 = sphi 0, %s151
      %s154 = sphi 0, %s153
      %s168 = sphi 0, %s154
      %s176 = sphi 0, %s178
      %s179 = sphi 0, %s176
      %s180 = sphi 0, %s179
      %s196 = sphi 0, %s180
    $region4: #{tpu_custom_call.1} parent=1 // loop_header_branch
      %22 = sbr.rel (%p20) target = $region8
    $region5: #{tpu_custom_call.1} parent=1 // loop_body
      %s24 = ssub.s32 %s19, 1
      %s25 = ssub.s32 %s19, 2
      %s32 = sadd.s32 1, %s27
      %p33 = scmp.ge.s32.totalorder %s32, 1
      %s34 = scalar_select %p33, 0, %s32
      %s35 = sadd.s32 1, %s26
      %s36 = scalar_select %p33, %s35, %s26
      %p37 = scmp.ge.s32.totalorder %s36, 2
      %s38 = scalar_select %p37, 0, %s36
      %s40 = sadd.s32 %s39, 1
      %p43 = scmp.eq.s32.totalorder %s19, 1
      %p44 = scmp.ne.s32.totalorder %s39, %s41
      %p45 = scmp.eq.s32.totalorder %s19, 0
      %p46 = por %p44, %p45
      %p47 = scmp.ne.s32.totalorder %s39, %s41
      %p48 = scmp.eq.s32.totalorder %s24, 1
      %p49 = por %p47, %p48
      %p50 = scmp.ne.s32.totalorder %s41, %s42
      %p51 = scmp.eq.s32.totalorder %s24, 0
      %p52 = por %p50, %p51
      %p53 = scmp.ne.s32.totalorder %s41, %s42
      %p54 = scmp.eq.s32.totalorder %s25, 1
      %p55 = por %p53, %p54
      %p57 = scmp.ne.s32.totalorder %s42, %s56
      %p58 = scmp.eq.s32.totalorder %s25, 0
      %p59 = por %p57, %p58
      %s60 = ssub.s32 %s26, %s38
      %s61 = ssub.s32 %s27, %s34
      %s62 = sor.u32 %s60, %s61
      %p63 = scmp.eq.s32.totalorder %s62, 0
      %s65 = sadd.s32 %s64, 1
      %s66 = scalar_select %p63, %s64, %s65
      %p69 = pneg %p63
      %p70 = scmp.eq.s32.totalorder %s19, 1
      %p71 = por %p69, %p70
      %p72 = scmp.ne.s32.totalorder %s64, %s67
      %p73 = scmp.eq.s32.totalorder %s19, 0
      %p74 = por %p72, %p73
      %p75 = scmp.ne.s32.totalorder %s64, %s67
      %p76 = scmp.eq.s32.totalorder %s24, 1
      %p77 = por %p75, %p76
      %p78 = scmp.ne.s32.totalorder %s67, %s68
      %p79 = scmp.eq.s32.totalorder %s24, 0
      %p80 = por %p78, %p79
      %p81 = scmp.ne.s32.totalorder %s67, %s68
      %p82 = scmp.eq.s32.totalorder %s25, 1
      %p83 = por %p81, %p82
      %p85 = scmp.ne.s32.totalorder %s68, %s84
      %p86 = scmp.eq.s32.totalorder %s25, 0
      %p87 = por %p85, %p86
      %s89 = sadd.s32 %s88, 1
      %p92 = scmp.eq.s32.totalorder %s19, 1
      %p93 = scmp.ne.s32.totalorder %s88, %s90
      %p94 = scmp.eq.s32.totalorder %s19, 0
      %p95 = por %p93, %p94
      %p96 = scmp.ne.s32.totalorder %s88, %s90
      %p97 = scmp.eq.s32.totalorder %s24, 1
      %p98 = por %p96, %p97
      %p99 = scmp.ne.s32.totalorder %s90, %s91
      %p100 = scmp.eq.s32.totalorder %s24, 0
      %p101 = por %p99, %p100
      %p102 = scmp.ne.s32.totalorder %s90, %s91
      %p103 = scmp.eq.s32.totalorder %s25, 1
      %p104 = por %p102, %p103
      %p106 = scmp.ne.s32.totalorder %s91, %s105
      %p107 = scmp.eq.s32.totalorder %s25, 0
      %p108 = por %p106, %p107
      %s110 = sadd.s32 %s109, 1
      %p113 = scmp.eq.s32.totalorder %s19, 1
      %p114 = scmp.ne.s32.totalorder %s109, %s111
      %p115 = scmp.eq.s32.totalorder %s19, 0
      %p116 = por %p114, %p115
      %p117 = scmp.ne.s32.totalorder %s109, %s111
      %p118 = scmp.eq.s32.totalorder %s24, 1
      %p119 = por %p117, %p118
      %p120 = scmp.ne.s32.totalorder %s111, %s112
      %p121 = scmp.eq.s32.totalorder %s24, 0
      %p122 = por %p120, %p121
      %p123 = scmp.ne.s32.totalorder %s111, %s112
      %p124 = scmp.eq.s32.totalorder %s25, 1
      %p125 = por %p123, %p124
      %p127 = scmp.ne.s32.totalorder %s112, %s126
      %p128 = scmp.eq.s32.totalorder %s25, 0
      %p129 = por %p127, %p128
      %s131 = sadd.s32 %s130, 1
      %p134 = scmp.eq.s32.totalorder %s19, 1
      %p135 = scmp.ne.s32.totalorder %s130, %s132
      %p136 = scmp.eq.s32.totalorder %s19, 0
      %p137 = por %p135, %p136
      %p138 = scmp.ne.s32.totalorder %s130, %s132
      %p139 = scmp.eq.s32.totalorder %s24, 1
      %p140 = por %p138, %p139
      %p141 = scmp.ne.s32.totalorder %s132, %s133
      %p142 = scmp.eq.s32.totalorder %s24, 0
      %p143 = por %p141, %p142
      %p144 = scmp.ne.s32.totalorder %s132, %s133
      %p145 = scmp.eq.s32.totalorder %s25, 1
      %p146 = por %p144, %p145
      %p148 = scmp.ne.s32.totalorder %s133, %s147
      %p149 = scmp.eq.s32.totalorder %s25, 0
      %p150 = por %p148, %p149
      %s152 = sadd.s32 %s151, 1
      %p155 = scmp.eq.s32.totalorder %s19, 1
      %p156 = scmp.ne.s32.totalorder %s151, %s153
      %p157 = scmp.eq.s32.totalorder %s19, 0
      %p158 = por %p156, %p157
      %p159 = scmp.ne.s32.totalorder %s151, %s153
      %p160 = scmp.eq.s32.totalorder %s24, 1
      %p161 = por %p159, %p160
      %p162 = scmp.ne.s32.totalorder %s153, %s154
      %p163 = scmp.eq.s32.totalorder %s24, 0
      %p164 = por %p162, %p163
      %p165 = scmp.ne.s32.totalorder %s153, %s154
      %p166 = scmp.eq.s32.totalorder %s25, 1
      %p167 = por %p165, %p166
      %p169 = scmp.ne.s32.totalorder %s154, %s168
      %p170 = scmp.eq.s32.totalorder %s25, 0
      %p171 = por %p169, %p170
      %s172 = ssub.s32 %s26, %s38
      %s173 = ssub.s32 %s27, %s34
      %s174 = sor.u32 %s172, %s173
      %p175 = scmp.eq.s32.totalorder %s174, 0
      %s177 = sadd.s32 %s176, 1
      %s178 = scalar_select %p175, %s176, %s177
      %p181 = pneg %p175
      %p182 = scmp.eq.s32.totalorder %s19, 1
      %p183 = por %p181, %p182
      %p184 = scmp.ne.s32.totalorder %s176, %s179
      %p185 = scmp.eq.s32.totalorder %s19, 0
      %p186 = por %p184, %p185
      %p187 = scmp.ne.s32.totalorder %s176, %s179
      %p188 = scmp.eq.s32.totalorder %s24, 1
      %p189 = por %p187, %p188
      %p190 = scmp.ne.s32.totalorder %s179, %s180
      %p191 = scmp.eq.s32.totalorder %s24, 0
      %p192 = por %p190, %p191
      %p193 = scmp.ne.s32.totalorder %s179, %s180
      %p194 = scmp.eq.s32.totalorder %s25, 1
      %p195 = por %p193, %p194
      %p197 = scmp.ne.s32.totalorder %s180, %s196
      %p198 = scmp.eq.s32.totalorder %s25, 0
      %p199 = por %p197, %p198
      %p200 = scmp.le.s32.totalorder 1, %s19
      %p201 = scmp.lt.s32.totalorder %s19, 3
      %p202 = pnand %p200, %p201
      %p203 = pneg %p202
      // Predicated region
      $region9: #{tpu_custom_call.1} parent=5 // pred_check
        _
      $region10: #{tpu_custom_call.1} parent=5 // pred_check_branch
        %205 = sbr.rel (%p202) target = $region12
      $region11: #{tpu_custom_call.1} parent=5 // pred_region
        %s206 = ssub.s32 %s19, 1
        // Predicated region
        $region13: #{tpu_custom_call.1} parent=11 // pred_check
          %p207 = pneg %p52
        $region14: #{tpu_custom_call.1} parent=11 // pred_check_branch
          %209 = sbr.rel (%p207) target = $region16
        $region15: #{tpu_custom_call.1} parent=11 // pred_region
          _
        $region16: #{tpu_custom_call.1} parent=11 // pred_fallthru
          _
        // Predicated region
        $region17: #{tpu_custom_call.1} parent=11 // pred_check
          %p210 = pneg %p101
        $region18: #{tpu_custom_call.1} parent=11 // pred_check_branch
          %212 = sbr.rel (%p210) target = $region20
        $region19: #{tpu_custom_call.1} parent=11 // pred_region
          _
        $region20: #{tpu_custom_call.1} parent=11 // pred_fallthru
          _
        // Predicated region
        $region21: #{tpu_custom_call.1} parent=11 // pred_check
          %p213 = pneg %p122
        $region22: #{tpu_custom_call.1} parent=11 // pred_check_branch
          %215 = sbr.rel (%p213) target = $region24
        $region23: #{tpu_custom_call.1} parent=11 // pred_region
          _
        $region24: #{tpu_custom_call.1} parent=11 // pred_fallthru
          _
        // Predicated region
        $region25: #{tpu_custom_call.1} parent=11 // pred_check
          %p216 = pneg %p143
        $region26: #{tpu_custom_call.1} parent=11 // pred_check_branch
          %218 = sbr.rel (%p216) target = $region28
        $region27: #{tpu_custom_call.1} parent=11 // pred_region
          _
        $region28: #{tpu_custom_call.1} parent=11 // pred_fallthru
          _
        // Predicated region
        $region29: #{tpu_custom_call.1} parent=11 // pred_check
          %p219 = pneg %p164
        $region30: #{tpu_custom_call.1} parent=11 // pred_check_branch
          %221 = sbr.rel (%p219) target = $region32
        $region31: #{tpu_custom_call.1} parent=11 // pred_region
          _
        $region32: #{tpu_custom_call.1} parent=11 // pred_fallthru
          _
      $region12: #{tpu_custom_call.1} parent=5 // pred_fallthru
        _
      %p222 = scmp.lt.s32.totalorder %s19, 2
      // Predicated region
      $region33: #{tpu_custom_call.1} parent=5 // pred_check
        %p223 = pneg %p222
      $region34: #{tpu_custom_call.1} parent=5 // pred_check_branch
        %225 = sbr.rel (%p223) target = $region36
      $region35: #{tpu_custom_call.1} parent=5 // pred_region
        // Predicated region
        $region37: #{tpu_custom_call.1} parent=35 // pred_check
          %p226 = pneg %p74
        $region38: #{tpu_custom_call.1} parent=35 // pred_check_branch
          %228 = sbr.rel (%p226) target = $region40
        $region39: #{tpu_custom_call.1} parent=35 // pred_region
          %s229 = sand.u32 %s64, 1
          %s230 = scalar_lea.sflag [#allocation4], %s229
          %s231 = sand.u32 %s64, 1
          %s232 = smul.addr %s231, 64
          %s233 = scalar_lea.vmem [#allocation3], %s232
          %s234 = smul.u32 2, %s27
          %s236 = ssub.s32 1024, 1024
          %237 = vsyncadd %s230, %s236
          %s238 = smul.addr %s26, 8
          %s239 = sadd.s32 %s234, %s238
          %s240 = smul.addr %s239, 128
          %s241 = scalar_lea.hbm %s1, %s240
          %s242 = sshll.u32 %s233, 4
          %s243 = int_to_ptr.vmem [resolvable:$true] %s242
          %248 = dma.hbm_to_vmem [thread:$0]  %s241, 1024, %s243, %s230, 256, 256, 16
        $region40: #{tpu_custom_call.1} parent=35 // pred_fallthru
          _
      $region36: #{tpu_custom_call.1} parent=5 // pred_fallthru
        _
      %p249 = scmp.le.s32.totalorder 1, %s19
      %p250 = scmp.lt.s32.totalorder %s19, 3
      %p251 = pnand %p249, %p250
      %p252 = pneg %p251
      // Predicated region
      $region41: #{tpu_custom_call.1} parent=5 // pred_check
        _
      $region42: #{tpu_custom_call.1} parent=5 // pred_check_branch
        %254 = sbr.rel (%p251) target = $region44
      $region43: #{tpu_custom_call.1} parent=5 // pred_region
        %s255 = ssub.s32 %s19, 1
        %s256 = sand.u32 %s67, 1
        %s257 = scalar_lea.sflag [#allocation4], %s256
        %s258 = sand.u32 %s67, 1
        %s259 = smul.addr %s258, 64
        %s260 = scalar_lea.vmem [#allocation3], %s259
        // Predicated region
        $region45: #{tpu_custom_call.1} parent=43 // pred_check
          %p261 = pneg %p80
        $region46: #{tpu_custom_call.1} parent=43 // pred_check_branch
          %263 = sbr.rel (%p261) target = $region48
        $region47: #{tpu_custom_call.1} parent=43 // pred_region
          %264 = dma.done %s257, 1024
        $region48: #{tpu_custom_call.1} parent=43 // pred_fallthru
          _
        %p265 = pneg %p52
        %p266 = pneg %p49
        %s267 = sand.u32 %s67, 1
        %s268 = scalar_lea.sflag [#allocation4], %s267
        %s269 = sand.u32 %s67, 1
        %s270 = smul.addr %s269, 64
        %s271 = scalar_lea.vmem [#allocation3], %s270
        %p272 = pneg %p80
        %p273 = pneg %p77
        %p274 = pneg %p101
        %p275 = pneg %p98
        %p276 = pneg %p122
        %p277 = pneg %p119
        %p278 = pneg %p143
        %p279 = pneg %p140
        %p280 = pneg %p164
        %p281 = pneg %p161
        %p282 = pneg %p192
        %p283 = pneg %p189
        %s284 = sand.u32 %s179, 1
        %s285 = scalar_lea.sflag [#allocation5], %s284
        %s286 = sand.u32 %s179, 1
        %s287 = smul.addr %s286, 64
        %s288 = scalar_lea.vmem [#allocation6], %s287
        %s289 = smul.u32 2, %s29
        %s290 = smul.u32 2, %s29
        %v291 = vld [vmem:[%s260] sm:$0xff]
        %v292 = vld [vmem:[%s260 + $0x8] sm:$0xff]
        %v293 = vld [vmem:[%s260 + $0x10] sm:$0xff]
        %v294 = vld [vmem:[%s260 + $0x18] sm:$0xff]
        %v295 = vld [vmem:[%s260 + $0x20] sm:$0xff]
        %v296 = vld [vmem:[%s260 + $0x28] sm:$0xff]
        %v297 = vld [vmem:[%s260 + $0x30] sm:$0xff]
        %v298 = vld [vmem:[%s260 + $0x38] sm:$0xff]
        %v299 = vld [vmem:[%s2] sm:$0xff]
        %v300 = vld [vmem:[%s3] sm:$0xff]
        %302 = vset.pattern.permute.xlu0 0
        %303 = vperm.xlu0 %302, %v300
        %v304 = vpop.permute.xlu0 %303
        %vm306 = vcmask 261120
        %v308 = vsel %vm306, %v299, 0
        %310 = vmatprep.subr.mxu0 %v292
        %311 = vmatpush1.msra.mxu0 %v291
        %312 = vmatprep.subr.mxu0 %v294
        %313 = vmatpush1.msra.mxu0 %v293
        %314 = vmatprep.subr.mxu0 %v296
        %315 = vmatpush1.msra.mxu0 %v295
        %316 = vmatprep.subr.mxu0 %v298
        %317 = vmatpush1.msra.mxu0 %v297
        %318 = vmatprep.subr.mxu0 0.0
        %319 = vmatpush1.msra.mxu0 0.0
        %320 = vmatprep.subr.mxu0 0.0
        %321 = vmatpush1.msra.mxu0 0.0
        %322 = vmatprep.subr.mxu0 0.0
        %323 = vmatpush1.msra.mxu0 0.0
        %324 = vmatprep.subr.mxu0 0.0
        %325 = vmatpush1.msra.mxu0 0.0
        %326 = vmatprep.subr.mxu0 0.0
        %327 = vmatpush1.msra.mxu0 0.0
        %328 = vmatprep.subr.mxu0 0.0
        %329 = vmatpush1.msra.mxu0 0.0
        %330 = vmatprep.subr.mxu0 0.0
        %331 = vmatpush1.msra.mxu0 0.0
        %332 = vmatprep.subr.mxu0 0.0
        %333 = vmatpush1.msra.mxu0 0.0
        %334 = vmatprep.subr.mxu0 0.0
        %335 = vmatpush1.msra.mxu0 0.0
        %336 = vmatprep.subr.mxu0 0.0
        %337 = vmatpush1.msra.mxu0 0.0
        %338 = vmatprep.subr.mxu0 0.0
        %339 = vmatpush1.msra.mxu0 0.0
        %340 = vmatprep.subr.mxu0 0.0
        %341 = vmatpush1.msra.mxu0 0.0
        %342 = vmatprep.subr.mxu0 0.0
        %343 = vmatpush1.msra.mxu0 0.0
        %344 = vmatprep.subr.mxu0 0.0
        %345 = vmatpush1.msra.mxu0 0.0
        %346 = vmatprep.subr.mxu0 0.0
        %347 = vmatpush1.msra.mxu0 0.0
        %348 = vmatprep.subr.mxu0 0.0
        %349 = vmatpush1.msra.mxu0 0.0
        %350 = vmatprep.subr.mxu0 0.0
        %351 = vmatpush1.msra.mxu0 0.0
        %352 = vmatprep.subr.mxu0 0.0
        %353 = vmatpush1.msra.mxu0 0.0
        %354 = vmatprep.subr.mxu0 0.0
        %355 = vmatpush1.msra.mxu0 0.0
        %356 = vmatprep.subr.mxu0 0.0
        %357 = vmatpush1.msra.mxu0 0.0
        %358 = vmatprep.subr.mxu0 0.0
        %359 = vmatpush1.msra.mxu0 0.0
        %360 = vmatprep.subr.mxu0 0.0
        %361 = vmatpush1.msra.mxu0 0.0
        %362 = vmatprep.subr.mxu0 0.0
        %363 = vmatpush1.msra.mxu0 0.0
        %364 = vmatprep.subr.mxu0 0.0
        %365 = vmatpush1.msra.mxu0 0.0
        %366 = vmatprep.subr.mxu0 0.0
        %367 = vmatpush1.msra.mxu0 0.0
        %368 = vmatprep.subr.mxu0 0.0
        %369 = vmatpush1.msra.mxu0 0.0
        %370 = vmatprep.subr.mxu0 0.0
        %371 = vmatpush1.msra.mxu0 0.0
        %372 = vmatprep.subr.mxu0 0.0
        %373 = vmatpush1.msra.mxu0 0.0
        %374 = vmatprep.mubr.f32.mxu0 0.0
        %375 = vmatmul.mubr.f32.gmra.mrb[0].mxu0 %v308
        %v376 = vpop.f32.mrb[0].mxu0
        %v377 = vadd.f32 %v304, %v376
        %v378 = vpop.f32.mrb[0].mxu0
        %v379 = vadd.f32 %v304, %v378
        %380 = vdwg.mxu0
        %v381 = vmul.f32 %v377, 0.5
        %v382 = vmul.f32 %v379, 0.5
        %v383 = vmul.f32 %v377, 0.044715
        %v384 = vmul.f32 %v379, 0.044715
        %v385 = vmul.f32 %v383, %v377
        %v386 = vmul.f32 %v384, %v379
        %v387 = vmul.f32 %v385, %v377
        %v388 = vmul.f32 %v386, %v379
        %v389 = vadd.f32 %v377, %v387
        %v390 = vadd.f32 %v379, %v388
        %v391 = vmul.f32 %v389, 0.7978846
        %v392 = vmul.f32 %v390, 0.7978846
        %v393 = vtanh.pop %v391
        %v394 = vtanh.pop %v392
        %v395 = vadd.f32 %v393, 1.0
        %v396 = vadd.f32 %v394, 1.0
        %v397 = vmul.f32 %v381, %v395
        %v398 = vmul.f32 %v382, %v396
        %v399 = vld [vmem:[%s4] sm:$0xff]
        %v400 = vld [vmem:[%s4 + $0x8] sm:$0xff]
        %v401 = vld [vmem:[%s4 + $0x10] sm:$0xff]
        %v402 = vld [vmem:[%s4 + $0x18] sm:$0xff]
        %v403 = vld [vmem:[%s5] sm:$0xff]
        %v404 = vld [vmem:[%s5 + $0x8] sm:$0xff]
        %v405 = vld [vmem:[%s5 + $0x10] sm:$0xff]
        %v406 = vld [vmem:[%s5 + $0x18] sm:$0xff]
        %408 = vset.pattern.permute.xlu0 0
        %409 = vperm.xlu0 %408, %v403
        %v410 = vpop.permute.xlu0 %409
        %413 = vset.pattern.permute.xlu0 0
        %414 = vperm.xlu0 %413, %v404
        %v415 = vpop.permute.xlu0 %414
        %418 = vset.pattern.permute.xlu0 0
        %419 = vperm.xlu0 %418, %v405
        %v420 = vpop.permute.xlu0 %419
        %423 = vset.pattern.permute.xlu0 0
        %424 = vperm.xlu0 %423, %v406
        %v425 = vpop.permute.xlu0 %424
        %vm427 = vcmask 64512
        %v429 = vsel %vm427, %v399, 0
        %v432 = vsel %vm427, %v400, 0
        %v435 = vsel %vm427, %v401, 0
        %v438 = vsel %vm427, %v402, 0
        %440 = vmatprep.subr.mxu0 %v398
        %441 = vmatpush1.msra.mxu0 %v397
        %442 = vmatprep.subr.mxu0 0.0
        %443 = vmatpush1.msra.mxu0 0.0
        %444 = vmatprep.subr.mxu0 0.0
        %445 = vmatpush1.msra.mxu0 0.0
        %446 = vmatprep.subr.mxu0 0.0
        %447 = vmatpush1.msra.mxu0 0.0
        %448 = vmatprep.subr.mxu0 0.0
        %449 = vmatpush1.msra.mxu0 0.0
        %450 = vmatprep.subr.mxu0 0.0
        %451 = vmatpush1.msra.mxu0 0.0
        %452 = vmatprep.subr.mxu0 0.0
        %453 = vmatpush1.msra.mxu0 0.0
        %454 = vmatprep.subr.mxu0 0.0
        %455 = vmatpush1.msra.mxu0 0.0
        %456 = vmatprep.subr.mxu0 0.0
        %457 = vmatpush1.msra.mxu0 0.0
        %458 = vmatprep.subr.mxu0 0.0
        %459 = vmatpush1.msra.mxu0 0.0
        %460 = vmatprep.subr.mxu0 0.0
        %461 = vmatpush1.msra.mxu0 0.0
        %462 = vmatprep.subr.mxu0 0.0
        %463 = vmatpush1.msra.mxu0 0.0
        %464 = vmatprep.subr.mxu0 0.0
        %465 = vmatpush1.msra.mxu0 0.0
        %466 = vmatprep.subr.mxu0 0.0
        %467 = vmatpush1.msra.mxu0 0.0
        %468 = vmatprep.subr.mxu0 0.0
        %469 = vmatpush1.msra.mxu0 0.0
        %470 = vmatprep.subr.mxu0 0.0
        %471 = vmatpush1.msra.mxu0 0.0
        %472 = vmatprep.subr.mxu0 0.0
        %473 = vmatpush1.msra.mxu0 0.0
        %474 = vmatprep.subr.mxu0 0.0
        %475 = vmatpush1.msra.mxu0 0.0
        %476 = vmatprep.subr.mxu0 0.0
        %477 = vmatpush1.msra.mxu0 0.0
        %478 = vmatprep.subr.mxu0 0.0
        %479 = vmatpush1.msra.mxu0 0.0
        %480 = vmatprep.subr.mxu0 0.0
        %481 = vmatpush1.msra.mxu0 0.0
        %482 = vmatprep.subr.mxu0 0.0
        %483 = vmatpush1.msra.mxu0 0.0
        %484 = vmatprep.subr.mxu0 0.0
        %485 = vmatpush1.msra.mxu0 0.0
        %486 = vmatprep.subr.mxu0 0.0
        %487 = vmatpush1.msra.mxu0 0.0
        %488 = vmatprep.subr.mxu0 0.0
        %489 = vmatpush1.msra.mxu0 0.0
        %490 = vmatprep.subr.mxu0 0.0
        %491 = vmatpush1.msra.mxu0 0.0
        %492 = vmatprep.subr.mxu0 0.0
        %493 = vmatpush1.msra.mxu0 0.0
        %494 = vmatprep.subr.mxu0 0.0
        %495 = vmatpush1.msra.mxu0 0.0
        %496 = vmatprep.subr.mxu0 0.0
        %497 = vmatpush1.msra.mxu0 0.0
        %498 = vmatprep.subr.mxu0 0.0
        %499 = vmatpush1.msra.mxu0 0.0
        %500 = vmatprep.subr.mxu0 0.0
        %501 = vmatpush1.msra.mxu0 0.0
        %502 = vmatprep.subr.mxu0 0.0
        %503 = vmatpush1.msra.mxu0 0.0
        %504 = vmatprep.mubr.f32.mxu0 0.0
        %505 = vmatmul.mubr.f32.gmra.mrb[0].mxu0 %v429
        %v506 = vpop.f32.mrb[0].mxu0
        %v507 = vadd.f32 %v410, %v506
        %v508 = vpop.f32.mrb[0].mxu0
        %v509 = vadd.f32 %v410, %v508
        %510 = vmatprep.mubr.f32.mxu0 0.0
        %511 = vmatmul.mubr.f32.gmra.mrb[0].mxu0 %v432
        %v512 = vpop.f32.mrb[0].mxu0
        %v513 = vadd.f32 %v415, %v512
        %v514 = vpop.f32.mrb[0].mxu0
        %v515 = vadd.f32 %v415, %v514
        %516 = vmatprep.mubr.f32.mxu0 0.0
        %517 = vmatmul.mubr.f32.gmra.mrb[0].mxu0 %v435
        %v518 = vpop.f32.mrb[0].mxu0
        %v519 = vadd.f32 %v420, %v518
        %v520 = vpop.f32.mrb[0].mxu0
        %v521 = vadd.f32 %v420, %v520
        %522 = vmatprep.mubr.f32.mxu0 0.0
        %523 = vmatmul.mubr.f32.gmra.mrb[0].mxu0 %v438
        %v524 = vpop.f32.mrb[0].mxu0
        %v525 = vadd.f32 %v425, %v524
        %v526 = vpop.f32.mrb[0].mxu0
        %v527 = vadd.f32 %v425, %v526
        %528 = vdwg.mxu0
        %s529 = sld [smem:[#allocation2]]
        %v530 = vstv %s529
        %v531 = vmul.f32 %v507, %v530
        %v532 = vmul.f32 %v509, %v530
        %v533 = vmul.f32 %v513, %v530
        %v534 = vmul.f32 %v515, %v530
        %v535 = vmul.f32 %v519, %v530
        %v536 = vmul.f32 %v521, %v530
        %v537 = vmul.f32 %v525, %v530
        %v538 = vmul.f32 %v527, %v530
        %v539 = vadd.f32 %v531, %v291
        %v540 = vadd.f32 %v532, %v292
        %v541 = vadd.f32 %v533, %v293
        %v542 = vadd.f32 %v534, %v294
        %v543 = vadd.f32 %v535, %v295
        %v544 = vadd.f32 %v536, %v296
        %v545 = vadd.f32 %v537, %v297
        %v546 = vadd.f32 %v538, %v298
        %547 = vst [vmem:[%s288] sm:$0xff] %v539
        %548 = vst [vmem:[%s288 + $0x8] sm:$0xff] %v540
        %549 = vst [vmem:[%s288 + $0x10] sm:$0xff] %v541
        %550 = vst [vmem:[%s288 + $0x18] sm:$0xff] %v542
        %551 = vst [vmem:[%s288 + $0x20] sm:$0xff] %v543
        %552 = vst [vmem:[%s288 + $0x28] sm:$0xff] %v544
        %553 = vst [vmem:[%s288 + $0x30] sm:$0xff] %v545
        %554 = vst [vmem:[%s288 + $0x38] sm:$0xff] %v546
        %s555 = sand.u32 %s179, 1
        %s556 = scalar_lea.sflag [#allocation5], %s555
        %s557 = sand.u32 %s179, 1
        %s558 = smul.addr %s557, 64
        %s559 = scalar_lea.vmem [#allocation6], %s558
        // Predicated region
        $region49: #{tpu_custom_call.1} parent=43 // pred_check
          %p560 = pneg %p189
        $region50: #{tpu_custom_call.1} parent=43 // pred_check_branch
          %562 = sbr.rel (%p560) target = $region52
        $region51: #{tpu_custom_call.1} parent=43 // pred_region
          %s563 = smul.u32 2, %s29
          %s565 = ssub.s32 1024, 1024
          %566 = vsyncadd %s556, %s565
          %s567 = smul.addr %s28, 8
          %s568 = sadd.s32 %s563, %s567
          %s569 = smul.addr %s568, 128
          %s570 = scalar_lea.hbm %s6, %s569
          %s571 = sshll.u32 %s559, 4
          %s572 = int_to_ptr.vmem [resolvable:$true] %s571
          %577 = dma.vmem_to_hbm [thread:$0]  %s572, 1024, %s570, %s556, 256, 256, 16
        $region52: #{tpu_custom_call.1} parent=43 // pred_fallthru
          _
      $region44: #{tpu_custom_call.1} parent=5 // pred_fallthru
        _
      %p578 = scmp.le.s32.totalorder 2, %s19
      // Predicated region
      $region53: #{tpu_custom_call.1} parent=5 // pred_check
        %p579 = pneg %p578
      $region54: #{tpu_custom_call.1} parent=5 // pred_check_branch
        %581 = sbr.rel (%p579) target = $region56
      $region55: #{tpu_custom_call.1} parent=5 // pred_region
        %s582 = ssub.s32 %s19, 2
        // Predicated region
        $region57: #{tpu_custom_call.1} parent=55 // pred_check
          %p583 = pneg %p195
        $region58: #{tpu_custom_call.1} parent=55 // pred_check_branch
          %585 = sbr.rel (%p583) target = $region60
        $region59: #{tpu_custom_call.1} parent=55 // pred_region
          %s586 = sand.u32 %s180, 1
          %s587 = scalar_lea.sflag [#allocation5], %s586
          %s588 = sand.u32 %s180, 1
          %s589 = smul.addr %s588, 64
          %s590 = scalar_lea.vmem [#allocation6], %s589
          %591 = dma.done %s587, 1024
        $region60: #{tpu_custom_call.1} parent=55 // pred_fallthru
          _
      $region56: #{tpu_custom_call.1} parent=5 // pred_fallthru
        _
    $region6: #{tpu_custom_call.1} parent=1 // loop_footer
      %s23 = sadd.s32 1, %s19
    $region7: #{tpu_custom_call.1} parent=1 // loop_footer_branch
      %18 = sbr.rel target = $region3
    $region8: #{tpu_custom_call.1} parent=1 // loop_exit
      _
    %592 = vsyncpa [#allocation4], 1
    %s593 = scalar_lea.sflag [#allocation4], 1
    %594 = vsyncpa %s593, 1
    %595 = vsyncpa [#allocation5], 1
    %s596 = scalar_lea.sflag [#allocation5], 1
    %597 = vsyncpa %s596, 1

</llo_original>
